<compile_context>
chip_gen: v7x
topology: tpu7x:2x2x1
jax: 0.10.0
libtpu: 0.0.40
codegen_flags: <defaults>
</compile_context>

<pallas_src>
import jax
import jax.numpy as jnp
from jax.experimental import pallas as pl
from jax.experimental.pallas import tpu as pltpu


def _input_process_kernel(x_ref, w_ref, b_ref, o_ref):
    # x_ref: (TB, TS, K)   activations in native [bs, seq, K] layout
    # w_ref: (K, Np)       resident weight (pre-transposed, lane-padded)
    # b_ref: (1, Np)       resident bias (lane-padded)
    # o_ref: (TS, TB*Np)   lane-dense output slab; columns [b*Np, (b+1)*Np)
    #                      hold batch element b of this seq tile.
    tb, ts, k = x_ref.shape
    npad = w_ref.shape[1]

    # One big MXU matmul per step: (TB*TS, K) @ (K, Np), f32 accumulation.
    x2d = x_ref[...].reshape(tb * ts, k)           # free sublane merge
    y = jnp.dot(x2d, w_ref[...], preferred_element_type=jnp.float32)
    y = y + b_ref[...].astype(jnp.float32)         # single broadcast bias add
    y = y.astype(o_ref.dtype).reshape(tb, ts, npad)

    # TB static, lane-aligned (Np % 128 == 0) stores into the output slab.
    for b in range(tb):
        o_ref[:, b * npad:(b + 1) * npad] = y[b]


def _vmem_budget_bytes():
    """Device-derived scoped-VMEM budget (review: ~96 MiB on 128 MiB parts,
    ~48 MiB on 64 MiB v7x)."""
    try:
        cap = int(pltpu.get_tpu_info().vmem_capacity_bytes)
    except Exception:
        cap = 64 * 1024 * 1024                     # safe lower bound (v7x TC)
    return min(int(cap * 0.75), 100 * 1024 * 1024)


def _plan_tiles(bs, seq, K, Np, x_item, o_item, w_item, budget):
    """Pick (TB, TS) so double-buffered x/out tiles + resident weight fit."""
    # Resident weight + bias (pipeline keeps a double buffer even with a
    # constant index_map) + headroom for Mosaic internal scratch.
    fixed = 2 * K * Np * w_item + 2 * Np * w_item + 4 * 1024 * 1024
    avail = max(budget - fixed, 2 * 1024 * 1024)

    # Per output row: double-buffered x read + double-buffered out write +
    # in-kernel f32 matmul result.
    bytes_per_row = 2 * K * x_item + 2 * Np * o_item + Np * 4
    max_rows = max(8, avail // bytes_per_row)
    target_rows = min(4096, max_rows)              # amortize ~0.35us/step

    def round_ts(t):
        if seq <= 8:
            return seq                             # block dim == full array dim
        t = max(8, min(t, ((seq + 7) // 8) * 8))
        return (t // 8) * 8

    # Preferred: full batch per tile (contiguous writeback, 1-D grid over seq).
    TB = bs
    TS = round_ts(max(1, target_rows // TB))
    while seq > 8 and TS > 8 and TB * TS * bytes_per_row > avail:
        TS -= 8

    if TB * TS * bytes_per_row > avail and bs > 1:
        # Fallback: tile the batch axis as well.
        TB = max(1, min(bs, int(max_rows // max(8, TS))))
        TS = round_ts(max(1, target_rows // TB))
        while seq > 8 and TS > 8 and TB * TS * bytes_per_row > avail:
            TS -= 8

    # Keep >=2 programs on a 'parallel' axis so both v7x TensorCores get work.
    if TB == bs and pl.cdiv(seq, TS) == 1 and seq >= 16:
        TS = round_ts(-(-seq // 2))

    return TB, TS


def input_process_forward(x, weight, bias, out_dtype=None):
    """Pallas implementation of InputProcess.forward.

    x:      [bs, seq, input_feats]
    weight: [latent_dim, input_feats]   (PyTorch nn.Linear convention)
    bias:   [latent_dim]
    out_dtype: output dtype (default x.dtype; use bf16 on v6e/v7x to halve
               the dominant HBM write stream while accumulation stays f32)
    returns [seq, bs, latent_dim]
    """
    bs, seq, K = x.shape
    N = weight.shape[0]
    out_dtype = x.dtype if out_dtype is None else out_dtype

    # Lane-dense output: pad latent dim up to a multiple of 128.
    Np = max(128, ((N + 127) // 128) * 128)
    w_t = jnp.transpose(weight)                    # (K, N)  -- tiny, one-time
    if Np != N:
        w_t = jnp.pad(w_t, ((0, 0), (0, Np - N)))
        bias_p = jnp.pad(bias, (0, Np - N))
    else:
        bias_p = bias
    b_2d = bias_p.reshape(1, Np)

    budget = _vmem_budget_bytes()
    TB, TS = _plan_tiles(
        bs, seq, K, Np,
        jnp.dtype(x.dtype).itemsize,
        jnp.dtype(out_dtype).itemsize,
        jnp.dtype(w_t.dtype).itemsize,
        budget)

    if TB == bs:
        # 1-D grid over seq: contiguous (TS, bs*Np) output slab per step.
        grid = (pl.cdiv(seq, TS),)
        in_specs = [
            pl.BlockSpec((TB, TS, K), lambda s: (0, s, 0)),
            pl.BlockSpec((K, Np), lambda s: (0, 0)),
            pl.BlockSpec((1, Np), lambda s: (0, 0)),
        ]
        out_spec = pl.BlockSpec((TS, TB * Np), lambda s: (s, 0))
        dims = ("parallel",)
    else:
        # 2-D grid, seq fastest-varying -> near-sequential HBM reads of x.
        grid = (pl.cdiv(bs, TB), pl.cdiv(seq, TS))
        in_specs = [
            pl.BlockSpec((TB, TS, K), lambda b, s: (b, s, 0)),
            pl.BlockSpec((K, Np), lambda b, s: (0, 0)),
            pl.BlockSpec((1, Np), lambda b, s: (0, 0)),
        ]
        out_spec = pl.BlockSpec((TS, TB * Np), lambda b, s: (s, b))
        dims = ("parallel", "parallel")

    out2d = pl.pallas_call(
        _input_process_kernel,
        out_shape=jax.ShapeDtypeStruct((seq, bs * Np), out_dtype),
        grid_spec=pltpu.PrefetchScalarGridSpec(
            num_scalar_prefetch=0,
            grid=grid,
            in_specs=in_specs,
            out_specs=out_spec,
        ),
        compiler_params=pltpu.CompilerParams(
            dimension_semantics=dims,
            vmem_limit_bytes=int(budget)),
    )(x, w_t, b_2d)

    out = out2d.reshape(seq, bs, Np)               # free bitcast reshape
    if Np != N:
        # Extra HBM pass for non-128-multiple latent dims; no-op when aligned
        # (e.g. latent_dim=512).  Callers that can consume the padded slab
        # should pass a 128-multiple latent_dim instead.
        out = out[..., :N]
    return out


if __name__ == "__main__":
    # Small shapes consistent with the module's forward:
    #   x: [bs, seq, input_feats], Linear(input_feats -> latent_dim)
    bs, seq, input_feats, latent_dim = 2, 8, 16, 32

    key = jax.random.PRNGKey(0)
    kx, kw, kb = jax.random.split(key, 3)

    x = jax.random.normal(kx, (bs, seq, input_feats), dtype=jnp.float32)
    weight = jax.random.normal(kw, (latent_dim, input_feats), dtype=jnp.float32) * 0.02
    bias = jax.random.normal(kb, (latent_dim,), dtype=jnp.float32) * 0.02

    out = input_process_forward(x, weight, bias)
    out = jax.block_until_ready(out)

    # Reference check (pure JAX) mirroring the PyTorch forward semantics.
    ref = jnp.einsum("sbk,nk->sbn", jnp.transpose(x, (1, 0, 2)), weight) + bias
    assert out.shape == (seq, bs, latent_dim)
    assert jnp.allclose(out, ref, atol=1e-5, rtol=1e-5)

    print("KERNEL_OK")
</pallas_src>

<mosaic_0001>
module attributes {stable_mosaic.version = 11 : i64} {
  func.func @_input_process_kernel(%arg0: i32, %arg1: memref<2x8x16xf32, #tpu.memory_space<vmem>>, %arg2: memref<16x128xf32, #tpu.memory_space<vmem>>, %arg3: memref<1x128xf32, #tpu.memory_space<vmem>>, %arg4: memref<8x256xf32, #tpu.memory_space<vmem>>) attributes {dimension_semantics = [#tpu.dimension_semantics<parallel>], iteration_bounds = array<i64: 1>, scalar_prefetch = 0 : i64, scratch_operands = 0 : i64, tpu.core_type = #tpu.core_type<tc>, window_params = [{transform_indices = @transform_0, window_bounds = array<i64: 2, 8, 16>}, {pipeline_mode = #tpu.pipeline_mode<synchronous>, transform_indices = @transform_1, window_bounds = array<i64: 16, 128>}, {pipeline_mode = #tpu.pipeline_mode<synchronous>, transform_indices = @transform_2, window_bounds = array<i64: 1, 128>}, {transform_indices = @transform_3, window_bounds = array<i64: 8, 256>}]} {
    %c0 = arith.constant 0 : index
    %c0_0 = arith.constant 0 : index
    %c0_1 = arith.constant 0 : index
    %0 = vector.load %arg1[%c0, %c0_0, %c0_1] : memref<2x8x16xf32, #tpu.memory_space<vmem>>, vector<2x8x16xf32>
    %1 = vector.shape_cast %0 : vector<2x8x16xf32> to vector<16x16xf32>
    %c0_2 = arith.constant 0 : index
    %c0_3 = arith.constant 0 : index
    %2 = vector.load %arg2[%c0_2, %c0_3] : memref<16x128xf32, #tpu.memory_space<vmem>>, vector<16x128xf32>
    %cst = arith.constant dense<0.000000e+00> : vector<16x128xf32>
    %3 = tpu.matmul %1, %2, %cst {dimension_numbers = #tpu.dot_dimension_numbers<[1], [0], [0], [1], [0, 0, 1, 1], [], []>} : vector<16x16xf32>, vector<16x128xf32>, vector<16x128xf32> -> vector<16x128xf32>
    %c0_4 = arith.constant 0 : index
    %c0_5 = arith.constant 0 : index
    %4 = vector.load %arg3[%c0_4, %c0_5] : memref<1x128xf32, #tpu.memory_space<vmem>>, vector<1x128xf32>
    %5 = vector.broadcast %4 : vector<1x128xf32> to vector<16x128xf32>
    %6 = arith.addf %3, %5 : vector<16x128xf32>
    %7 = vector.shape_cast %6 : vector<16x128xf32> to vector<2x8x128xf32>
    %8 = vector.extract_strided_slice %7 {offsets = [0, 0, 0], sizes = [1, 8, 128], strides = [1, 1, 1]} : vector<2x8x128xf32> to vector<1x8x128xf32>
    %9 = vector.shape_cast %8 : vector<1x8x128xf32> to vector<8x128xf32>
    %c0_6 = arith.constant 0 : index
    %c0_7 = arith.constant 0 : index
    %10 = vector.load %arg4[%c0_6, %c0_7] : memref<8x256xf32, #tpu.memory_space<vmem>>, vector<8x128xf32>
    tpu.vector_store %arg4[%c0_6, %c0_7], %9 {strides = array<i32>} : memref<8x256xf32, #tpu.memory_space<vmem>>, vector<8x128xf32>,
    %11 = vector.extract_strided_slice %7 {offsets = [1, 0, 0], sizes = [1, 8, 128], strides = [1, 1, 1]} : vector<2x8x128xf32> to vector<1x8x128xf32>
    %12 = vector.shape_cast %11 : vector<1x8x128xf32> to vector<8x128xf32>
    %c0_8 = arith.constant 0 : index
    %c128 = arith.constant 128 : index
    %13 = vector.load %arg4[%c0_8, %c128] : memref<8x256xf32, #tpu.memory_space<vmem>>, vector<8x128xf32>
    tpu.vector_store %arg4[%c0_8, %c128], %12 {strides = array<i32>} : memref<8x256xf32, #tpu.memory_space<vmem>>, vector<8x128xf32>,
    return
  }
  func.func @transform_0(%arg0: i32) -> (i32, i32, i32) {
    %c0_i32 = arith.constant 0 : i32
    %c0_i32_0 = arith.constant 0 : i32
    %c0_i32_1 = arith.constant 0 : i32
    return %c0_i32, %arg0, %c0_i32_0 : i32, i32, i32
  }
  func.func @transform_1(%arg0: i32) -> (i32, i32) {
    %c0_i32 = arith.constant 0 : i32
    %c0_i32_0 = arith.constant 0 : i32
    %c0_i32_1 = arith.constant 0 : i32
    return %c0_i32, %c0_i32_0 : i32, i32
  }
  func.func @transform_2(%arg0: i32) -> (i32, i32) {
    %c0_i32 = arith.constant 0 : i32
    %c0_i32_0 = arith.constant 0 : i32
    %c0_i32_1 = arith.constant 0 : i32
    return %c0_i32, %c0_i32_0 : i32, i32
  }
  func.func @transform_3(%arg0: i32) -> (i32, i32) {
    %c0_i32 = arith.constant 0 : i32
    %c0_i32_0 = arith.constant 0 : i32
    return %arg0, %c0_i32 : i32, i32
  }
}

</mosaic_0001>

<llo_original>
// kernel: tpu_custom_call.1
$region0: #{tpu_custom_call.1}
  #allocation0 [shape = 'u32[]', space=smem, size = 0x4, offset = 0x4, fixed_abs, tag = 'smem constant byte address 0x4 - core index']
  #allocation1 [shape = 'u32[144,128]{1,0:T(1,128)}', space=vmem, size = 0x12000, scoped, tag = 'internal scratch']
  %s0 = inlined_call_operand.hbm [shape: f32[2,8,16], index: 0, kind: input, shape index: {}]
  %s1 = inlined_call_operand.hbm [shape: f32[16,128], index: 1, kind: input, shape index: {}]
  %s2 = inlined_call_operand.vmem [shape: f32[1,128], index: 2, kind: input, shape index: {}]
  %s3 = inlined_call_operand.hbm [shape: f32[8,256], index: 3, kind: output, shape index: {}]
  %s4 = sld [smem:[#allocation0]]
  $region30: #{tpu_custom_call.1} parent=0
    _
  %s6 = ssub.s32 1, %s4
  %s7 = scalar_select 0, %s6, %s4
  $region1: #{tpu_custom_call.1} parent=0
    #allocation2 [shape = 'u8[8192]{0}', space=vmem, size = 0x2000, scoped, tag = 'input window, operand 0, single buffered']
    #allocation3 [shape = 's32[1]{0}', space=sflag, size = 0x4, scoped, tag = 'scoped memory for tpu_custom_call.1']
    #allocation4 [shape = 's32[1]{0}', space=sflag, size = 0x4, scoped, tag = 'scoped memory for tpu_custom_call.1']
    #allocation5 [shape = 'u8[8192]{0}', space=vmem, size = 0x2000, scoped, tag = 'input window, operand 1, single buffered']
    #allocation6 [shape = 's32[1]{0}', space=sflag, size = 0x4, scoped, tag = 'scoped memory for tpu_custom_call.1']
    #allocation7 [shape = 'u8[8192]{0}', space=vmem, size = 0x2000, scoped, tag = 'output window, operand 0, single buffered']
    %8 = vsyncpa [#allocation3], 0
    %9 = vsyncpa [#allocation6], 0
    %10 = vsyncpa [#allocation4], 0
    // Predicated region
    $region2: #{tpu_custom_call.1} parent=1 // pred_check
      _
    $region3: #{tpu_custom_call.1} parent=1 // pred_check_branch
      %12 = sbr.rel (0) target = $region5
    $region4: #{tpu_custom_call.1} parent=1 // pred_region
      %s14 = ssub.s32 256, 256
      %15 = vsyncadd [#allocation3], %s14
      %s16 = sshll.u32 [#allocation2], 4
      %s17 = int_to_ptr.vmem [resolvable:$true] %s16
      %22 = dma.hbm_to_vmem [thread:$0]  %s0, 256, %s17, [#allocation3], 128, 128, 8
    $region5: #{tpu_custom_call.1} parent=1 // pred_fallthru
      _
    // Predicated region
    $region6: #{tpu_custom_call.1} parent=1 // pred_check
      _
    $region7: #{tpu_custom_call.1} parent=1 // pred_check_branch
      %24 = sbr.rel (0) target = $region9
    $region8: #{tpu_custom_call.1} parent=1 // pred_region
      %s26 = ssub.s32 256, 256
      %27 = vsyncadd [#allocation6], %s26
      %s28 = sshll.u32 [#allocation5], 4
      %s29 = int_to_ptr.vmem [resolvable:$true] %s28
      %34 = dma.hbm_to_vmem [thread:$0]  %s1, 256, %s29, [#allocation6], 128, 128, 8
    $region9: #{tpu_custom_call.1} parent=1 // pred_fallthru
      _
    // Predicated region
    $region10: #{tpu_custom_call.1} parent=1 // pred_check
      _
    $region11: #{tpu_custom_call.1} parent=1 // pred_check_branch
      %36 = sbr.rel (0) target = $region13
    $region12: #{tpu_custom_call.1} parent=1 // pred_region
      _
    $region13: #{tpu_custom_call.1} parent=1 // pred_fallthru
      _
    // Predicated region
    $region14: #{tpu_custom_call.1} parent=1 // pred_check
      _
    $region15: #{tpu_custom_call.1} parent=1 // pred_check_branch
      %38 = sbr.rel (0) target = $region17
    $region16: #{tpu_custom_call.1} parent=1 // pred_region
      %39 = dma.done [#allocation3], 256
    $region17: #{tpu_custom_call.1} parent=1 // pred_fallthru
      _
    // Predicated region
    $region18: #{tpu_custom_call.1} parent=1 // pred_check
      _
    $region19: #{tpu_custom_call.1} parent=1 // pred_check_branch
      %41 = sbr.rel (0) target = $region21
    $region20: #{tpu_custom_call.1} parent=1 // pred_region
      %42 = dma.done [#allocation6], 256
    $region21: #{tpu_custom_call.1} parent=1 // pred_fallthru
      _
    %v43 = vld [vmem:[#allocation2] sm:$0xff]
    %v44 = vld [vmem:[#allocation2 + $0x8] sm:$0xff]
    %v45 = vld [vmem:[#allocation5] sm:$0xff]
    %v46 = vld [vmem:[#allocation5 + $0x8] sm:$0xff]
    %v47 = vld [vmem:[%s2] sm:$0x1]
    %v49 = vlaneseq
    %v50 = vshrl.u32 %v49, 7
    %v51 = vsub.s32 0, %v50
    %v52 = vrot.slane %v47, %v51
    %vm54 = vcmask 130048
    %v56 = vsel %vm54, %v43, 0
    %v59 = vsel %vm54, %v44, 0
    %61 = vmatprep.subr.mxu0 0.0
    %62 = vmatpush1.msra.mxu0 %v45
    %63 = vmatprep.subr.mxu0 0.0
    %64 = vmatpush1.msra.mxu0 %v46
    %65 = vmatprep.subr.mxu0 0.0
    %66 = vmatpush1.msra.mxu0 0.0
    %67 = vmatprep.subr.mxu0 0.0
    %68 = vmatpush1.msra.mxu0 0.0
    %69 = vmatprep.subr.mxu0 0.0
    %70 = vmatpush1.msra.mxu0 0.0
    %71 = vmatprep.subr.mxu0 0.0
    %72 = vmatpush1.msra.mxu0 0.0
    %73 = vmatprep.subr.mxu0 0.0
    %74 = vmatpush1.msra.mxu0 0.0
    %75 = vmatprep.subr.mxu0 0.0
    %76 = vmatpush1.msra.mxu0 0.0
    %77 = vmatprep.subr.mxu0 0.0
    %78 = vmatpush1.msra.mxu0 0.0
    %79 = vmatprep.subr.mxu0 0.0
    %80 = vmatpush1.msra.mxu0 0.0
    %81 = vmatprep.subr.mxu0 0.0
    %82 = vmatpush1.msra.mxu0 0.0
    %83 = vmatprep.subr.mxu0 0.0
    %84 = vmatpush1.msra.mxu0 0.0
    %85 = vmatprep.subr.mxu0 0.0
    %86 = vmatpush1.msra.mxu0 0.0
    %87 = vmatprep.subr.mxu0 0.0
    %88 = vmatpush1.msra.mxu0 0.0
    %89 = vmatprep.subr.mxu0 0.0
    %90 = vmatpush1.msra.mxu0 0.0
    %91 = vmatprep.subr.mxu0 0.0
    %92 = vmatpush1.msra.mxu0 0.0
    %93 = vmatprep.subr.mxu0 0.0
    %94 = vmatpush1.msra.mxu0 0.0
    %95 = vmatprep.subr.mxu0 0.0
    %96 = vmatpush1.msra.mxu0 0.0
    %97 = vmatprep.subr.mxu0 0.0
    %98 = vmatpush1.msra.mxu0 0.0
    %99 = vmatprep.subr.mxu0 0.0
    %100 = vmatpush1.msra.mxu0 0.0
    %101 = vmatprep.subr.mxu0 0.0
    %102 = vmatpush1.msra.mxu0 0.0
    %103 = vmatprep.subr.mxu0 0.0
    %104 = vmatpush1.msra.mxu0 0.0
    %105 = vmatprep.subr.mxu0 0.0
    %106 = vmatpush1.msra.mxu0 0.0
    %107 = vmatprep.subr.mxu0 0.0
    %108 = vmatpush1.msra.mxu0 0.0
    %109 = vmatprep.subr.mxu0 0.0
    %110 = vmatpush1.msra.mxu0 0.0
    %111 = vmatprep.subr.mxu0 0.0
    %112 = vmatpush1.msra.mxu0 0.0
    %113 = vmatprep.subr.mxu0 0.0
    %114 = vmatpush1.msra.mxu0 0.0
    %115 = vmatprep.subr.mxu0 0.0
    %116 = vmatpush1.msra.mxu0 0.0
    %117 = vmatprep.subr.mxu0 0.0
    %118 = vmatpush1.msra.mxu0 0.0
    %119 = vmatprep.subr.mxu0 0.0
    %120 = vmatpush1.msra.mxu0 0.0
    %121 = vmatprep.subr.mxu0 0.0
    %122 = vmatpush1.msra.mxu0 0.0
    %123 = vmatprep.subr.mxu0 0.0
    %124 = vmatpush1.msra.mxu0 0.0
    %125 = vmatprep.mubr.f32.mxu0 0.0
    %126 = vmatmul.mubr.f32.gmra.mrb[0].mxu0 %v56
    %v127 = vpop.f32.mrb[0].mxu0
    %v128 = vadd.f32 %v52, %v127
    %v129 = vpop.f32.mrb[0].mxu0
    %130 = vmatprep.mubr.f32.mxu0 0.0
    %131 = vmatmul.mubr.f32.gmra.mrb[0].mxu0 %v59
    %v132 = vpop.f32.mrb[0].mxu0
    %v133 = vadd.f32 %v52, %v132
    %v134 = vpop.f32.mrb[0].mxu0
    %135 = vdwg.mxu0
    %136 = vst [vmem:[#allocation7] sm:$0xff] %v128
    %137 = vst [vmem:[#allocation7 + $0x8] sm:$0xff] %v133
    // Predicated region
    $region22: #{tpu_custom_call.1} parent=1 // pred_check
      _
    $region23: #{tpu_custom_call.1} parent=1 // pred_check_branch
      %139 = sbr.rel (0) target = $region25
    $region24: #{tpu_custom_call.1} parent=1 // pred_region
      %s141 = ssub.s32 256, 256
      %142 = vsyncadd [#allocation4], %s141
      %s144 = sshll.u32 [#allocation7], 4
      %s145 = int_to_ptr.vmem [resolvable:$true] %s144
      %147 = dma.vmem_to_hbm [thread:$0]  %s145, 256, %s3, [#allocation4]
    $region25: #{tpu_custom_call.1} parent=1 // pred_fallthru
      _
    // Predicated region
    $region26: #{tpu_custom_call.1} parent=1 // pred_check
      _
    $region27: #{tpu_custom_call.1} parent=1 // pred_check_branch
      %149 = sbr.rel (0) target = $region29
    $region28: #{tpu_custom_call.1} parent=1 // pred_region
      %150 = dma.done [#allocation4], 256
    $region29: #{tpu_custom_call.1} parent=1 // pred_fallthru
      _
    %151 = vsyncpa [#allocation3], 1
    %152 = vsyncpa [#allocation6], 1
    %153 = vsyncpa [#allocation4], 1

</llo_original>
